<compile_context>
chip_gen: v5e
topology: v5e:2x2
jax: 0.10.0
libtpu: 0.0.40
codegen_flags: <defaults>
</compile_context>

<pallas_src>
import jax
import jax.numpy as jnp
from jax.experimental import pallas as pl
from jax.experimental.pallas import tpu as pltpu

INPUT_SIZE = 6
HIDDEN_SIZE = 64
OUTPUT_SIZE = 6

# Packed-parameter slab layout (SLAB_ROWS x 64, f32), every section aligned to an 8-row sublane boundary:
#   rows   0..7   : W1 augmented  -> rows 0..5 = W1 (6,64), row 6 = b1, row 7 = 0
#   rows   8..71  : W2 (64,64)
#   rows  72..79  : row 72 = b2, rest 0
#   rows  80..143 : W3 padded to (64,64)  (cols 0..5 real, rest 0)
#   rows 144..151 : row 144 = b3 padded to 64 (cols 0..5 real, rest 0)
SLAB_ROWS = 152
AUG_IN = 8  # input width after appending the bias/ones column (6 -> 8, sublane friendly)


def boxer_kernel(x_ref, p_ref, o_ref):
    x = x_ref[...]                       # (TB, 8) : cols 0..5 = x, col 6 = 1.0, col 7 = 0.0
    w1a = p_ref[0:8, :]                  # (8, 64)  bias folded in (row 6)
    w2 = p_ref[8:72, :]                  # (64, 64)
    b2 = p_ref[72:73, :]                 # (1, 64)
    w3p = p_ref[80:144, :]               # (64, 64) cols 0..5 real, rest zero
    b3p = p_ref[144:145, :]              # (1, 64)  cols 0..5 real, rest zero

    # layer1 + relu (bias folded into the matmul via the ones column)
    h1 = jnp.maximum(jnp.dot(x, w1a, preferred_element_type=jnp.float32), 0.0)
    # layer2 + relu
    h2 = jnp.maximum(jnp.dot(h1, w2, preferred_element_type=jnp.float32) + b2, 0.0)
    # output logits (compute at width 64 on the MXU, then take the 6 real columns)
    logits = (jnp.dot(h2, w3p, preferred_element_type=jnp.float32) + b3p)[:, :OUTPUT_SIZE]

    # numerically stable softmax along last dim
    m = jnp.max(logits, axis=-1, keepdims=True)
    e = jnp.exp(logits - m)
    denom = jnp.sum(e, axis=-1, keepdims=True)
    o_ref[...] = (e * pl.reciprocal(denom, approx=False)).astype(o_ref.dtype)


def _round_up(n, m):
    return ((n + m - 1) // m) * m


def pack_params(params):
    """Pack (w1, b1, w2, b2, w3, b3) into a single (152, 64) f32 slab (one DMA instead of six)."""
    w1, b1, w2, b2, w3, b3 = params
    slab = jnp.zeros((SLAB_ROWS, HIDDEN_SIZE), jnp.float32)
    slab = slab.at[0:INPUT_SIZE, :].set(w1.astype(jnp.float32))
    slab = slab.at[INPUT_SIZE, :].set(b1.reshape(-1).astype(jnp.float32))
    slab = slab.at[8:8 + HIDDEN_SIZE, :].set(w2.astype(jnp.float32))
    slab = slab.at[72, :].set(b2.reshape(-1).astype(jnp.float32))
    slab = slab.at[80:80 + HIDDEN_SIZE, 0:OUTPUT_SIZE].set(w3.astype(jnp.float32))
    slab = slab.at[144, 0:OUTPUT_SIZE].set(b3.reshape(-1).astype(jnp.float32))
    return slab


def boxer_forward(x, packed_params, *, tile_batch=1024):
    B = x.shape[0]
    # Batch tile: multiple of 8 (sublane), capped by tile_batch; pad the batch up to a tile multiple.
    tb = min(_round_up(tile_batch, 8), max(_round_up(B, 8), 8))
    b_total = _round_up(max(B, 1), tb)
    n_tiles = b_total // tb

    # Augment: append a ones column (folds b1 into the layer-1 matmul) and a zero pad column -> width 8.
    x_aug = jnp.zeros((b_total, AUG_IN), jnp.float32)
    x_aug = x_aug.at[:B, :INPUT_SIZE].set(x.astype(jnp.float32))
    x_aug = x_aug.at[:B, INPUT_SIZE].set(1.0)

    out = pl.pallas_call(
        boxer_kernel,
        out_shape=jax.ShapeDtypeStruct((b_total, OUTPUT_SIZE), jnp.float32),
        grid=(n_tiles,),
        in_specs=[
            pl.BlockSpec((tb, AUG_IN), lambda i: (i, 0)),               # batch tile (double-buffered)
            pl.BlockSpec((SLAB_ROWS, HIDDEN_SIZE), lambda i: (0, 0)),   # packed params, VMEM-resident
        ],
        out_specs=pl.BlockSpec((tb, OUTPUT_SIZE), lambda i: (i, 0)),
        compiler_params=pltpu.CompilerParams(dimension_semantics=("parallel",)),
    )(x_aug, packed_params)
    return out[:B]


def init_params(key):
    # Deterministic init mimicking nn.Linear default (uniform in +/- 1/sqrt(fan_in)).
    def linear(key, fan_in, fan_out):
        kw, kb = jax.random.split(key)
        bound = 1.0 / jnp.sqrt(float(fan_in))
        w = jax.random.uniform(kw, (fan_in, fan_out), jnp.float32, -bound, bound)
        b = jax.random.uniform(kb, (1, fan_out), jnp.float32, -bound, bound)
        return w, b

    k1, k2, k3 = jax.random.split(key, 3)
    w1, b1 = linear(k1, INPUT_SIZE, HIDDEN_SIZE)
    w2, b2 = linear(k2, HIDDEN_SIZE, HIDDEN_SIZE)
    w3, b3 = linear(k3, HIDDEN_SIZE, OUTPUT_SIZE)
    return (w1, b1, w2, b2, w3, b3)


def reference_forward(x, params):
    w1, b1, w2, b2, w3, b3 = params
    h1 = jnp.maximum(x @ w1 + b1, 0.0)
    h2 = jnp.maximum(h1 @ w2 + b2, 0.0)
    return jax.nn.softmax(h2 @ w3 + b3, axis=-1)


if __name__ == "__main__":
    key = jax.random.PRNGKey(0)
    kx, kp = jax.random.split(key)

    params = init_params(kp)
    packed = pack_params(params)

    # Case 1: tiny batch, single grid step.
    x_small = jax.random.normal(kx, (8, INPUT_SIZE), jnp.float32)
    out_small = jax.block_until_ready(boxer_forward(x_small, packed))
    ref_small = reference_forward(x_small, params)
    assert out_small.shape == (8, OUTPUT_SIZE)
    assert jnp.allclose(out_small, ref_small, atol=1e-5, rtol=1e-5)
    assert jnp.allclose(jnp.sum(out_small, axis=-1), 1.0, atol=1e-5)

    # Case 2: batch that is not a tile multiple, small tile -> exercises the multi-step batch grid,
    # resident-weight pipelining, and batch padding (40 rows, 16-row tiles -> 3 grid steps).
    x_multi = jax.random.normal(jax.random.PRNGKey(1), (40, INPUT_SIZE), jnp.float32)
    out_multi = jax.block_until_ready(boxer_forward(x_multi, packed, tile_batch=16))
    ref_multi = reference_forward(x_multi, params)
    assert out_multi.shape == (40, OUTPUT_SIZE)
    assert jnp.allclose(out_multi, ref_multi, atol=1e-5, rtol=1e-5)
    assert jnp.allclose(jnp.sum(out_multi, axis=-1), 1.0, atol=1e-5)

    print("KERNEL_OK")
</pallas_src>

<mosaic_0001>
module attributes {stable_mosaic.version = 11 : i64} {
  func.func @boxer_kernel(%arg0: i32, %arg1: memref<8x8xf32, #tpu.memory_space<vmem>>, %arg2: memref<152x64xf32, #tpu.memory_space<vmem>>, %arg3: memref<8x6xf32, #tpu.memory_space<vmem>>) attributes {dimension_semantics = [#tpu.dimension_semantics<parallel>], iteration_bounds = array<i64: 1>, scalar_prefetch = 0 : i64, scratch_operands = 0 : i64, tpu.core_type = #tpu.core_type<tc>, window_params = [{transform_indices = @transform_0, window_bounds = array<i64: 8, 8>}, {pipeline_mode = #tpu.pipeline_mode<synchronous>, transform_indices = @transform_1, window_bounds = array<i64: 152, 64>}, {transform_indices = @transform_2, window_bounds = array<i64: 8, 6>}]} {
    %c0 = arith.constant 0 : index
    %c0_0 = arith.constant 0 : index
    %0 = vector.load %arg1[%c0, %c0_0] : memref<8x8xf32, #tpu.memory_space<vmem>>, vector<8x8xf32>
    %c0_1 = arith.constant 0 : index
    %c0_2 = arith.constant 0 : index
    %1 = vector.load %arg2[%c0_1, %c0_2] : memref<152x64xf32, #tpu.memory_space<vmem>>, vector<8x64xf32>
    %c8 = arith.constant 8 : index
    %c0_3 = arith.constant 0 : index
    %2 = vector.load %arg2[%c8, %c0_3] : memref<152x64xf32, #tpu.memory_space<vmem>>, vector<64x64xf32>
    %c72 = arith.constant 72 : index
    %c0_4 = arith.constant 0 : index
    %3 = vector.load %arg2[%c72, %c0_4] : memref<152x64xf32, #tpu.memory_space<vmem>>, vector<1x64xf32>
    %c80 = arith.constant 80 : index
    %c0_5 = arith.constant 0 : index
    %4 = vector.load %arg2[%c80, %c0_5] : memref<152x64xf32, #tpu.memory_space<vmem>>, vector<64x64xf32>
    %c144 = arith.constant 144 : index
    %c0_6 = arith.constant 0 : index
    %5 = vector.load %arg2[%c144, %c0_6] : memref<152x64xf32, #tpu.memory_space<vmem>>, vector<1x64xf32>
    %cst = arith.constant dense<0.000000e+00> : vector<8x64xf32>
    %6 = tpu.matmul %0, %1, %cst {dimension_numbers = #tpu.dot_dimension_numbers<[1], [0], [0], [1], [0, 0, 1, 1], [], []>} : vector<8x8xf32>, vector<8x64xf32>, vector<8x64xf32> -> vector<8x64xf32>
    %cst_7 = arith.constant 0.000000e+00 : f32
    %7 = vector.broadcast %cst_7 : f32 to vector<8x64xf32>
    %8 = arith.maximumf %6, %7 : vector<8x64xf32>
    %cst_8 = arith.constant dense<0.000000e+00> : vector<8x64xf32>
    %9 = tpu.matmul %8, %2, %cst_8 {dimension_numbers = #tpu.dot_dimension_numbers<[1], [0], [0], [1], [0, 0, 1, 1], [], []>} : vector<8x64xf32>, vector<64x64xf32>, vector<8x64xf32> -> vector<8x64xf32>
    %10 = vector.broadcast %3 : vector<1x64xf32> to vector<8x64xf32>
    %11 = arith.addf %9, %10 : vector<8x64xf32>
    %cst_9 = arith.constant 0.000000e+00 : f32
    %12 = vector.broadcast %cst_9 : f32 to vector<8x64xf32>
    %13 = arith.maximumf %11, %12 : vector<8x64xf32>
    %cst_10 = arith.constant dense<0.000000e+00> : vector<8x64xf32>
    %14 = tpu.matmul %13, %4, %cst_10 {dimension_numbers = #tpu.dot_dimension_numbers<[1], [0], [0], [1], [0, 0, 1, 1], [], []>} : vector<8x64xf32>, vector<64x64xf32>, vector<8x64xf32> -> vector<8x64xf32>
    %15 = vector.broadcast %5 : vector<1x64xf32> to vector<8x64xf32>
    %16 = arith.addf %14, %15 : vector<8x64xf32>
    %17 = vector.extract_strided_slice %16 {offsets = [0, 0], sizes = [8, 6], strides = [1, 1]} : vector<8x64xf32> to vector<8x6xf32>
    %cst_11 = arith.constant dense<0xFF800000> : vector<8xf32>
    %18 = vector.multi_reduction <maximumf>, %17, %cst_11 [1] : vector<8x6xf32> to vector<8xf32>
    %19 = vector.shape_cast %18 : vector<8xf32> to vector<8x1xf32>
    %20 = vector.broadcast %19 : vector<8x1xf32> to vector<8x6xf32>
    %21 = arith.subf %17, %20 : vector<8x6xf32>
    %22 = math.exp %21 : vector<8x6xf32>
    %cst_12 = arith.constant dense<0.000000e+00> : vector<8xf32>
    %23 = vector.multi_reduction <add>, %22, %cst_12 [1] : vector<8x6xf32> to vector<8xf32>
    %24 = vector.shape_cast %23 : vector<8xf32> to vector<8x1xf32>
    %25 = tpu.reciprocal %24 : vector<8x1xf32> -> vector<8x1xf32>
    %26 = vector.broadcast %25 : vector<8x1xf32> to vector<8x6xf32>
    %27 = arith.mulf %22, %26 : vector<8x6xf32>
    %c0_13 = arith.constant 0 : index
    %c0_14 = arith.constant 0 : index
    %28 = vector.load %arg3[%c0_13, %c0_14] : memref<8x6xf32, #tpu.memory_space<vmem>>, vector<8x6xf32>
    tpu.vector_store %arg3[%c0_13, %c0_14], %27 {strides = array<i32>} : memref<8x6xf32, #tpu.memory_space<vmem>>, vector<8x6xf32>,
    return
  }
  func.func @transform_0(%arg0: i32) -> (i32, i32) {
    %c0_i32 = arith.constant 0 : i32
    %c0_i32_0 = arith.constant 0 : i32
    return %arg0, %c0_i32 : i32, i32
  }
  func.func @transform_1(%arg0: i32) -> (i32, i32) {
    %c0_i32 = arith.constant 0 : i32
    %c0_i32_0 = arith.constant 0 : i32
    %c0_i32_1 = arith.constant 0 : i32
    return %c0_i32, %c0_i32_0 : i32, i32
  }
  func.func @transform_2(%arg0: i32) -> (i32, i32) {
    %c0_i32 = arith.constant 0 : i32
    %c0_i32_0 = arith.constant 0 : i32
    return %arg0, %c0_i32 : i32, i32
  }
}

</mosaic_0001>

<llo_original>
// kernel: tpu_custom_call.1
$region0: #{tpu_custom_call.1}
  #allocation0 [shape = 'u32[]', space=smem, size = 0x4, offset = 0x4, fixed_abs, tag = 'smem constant byte address 0x4 - core index']
  #allocation1 [shape = 'u32[72,128]{1,0:T(1,128)}', space=vmem, size = 0x9000, scoped, tag = 'internal scratch']
  %s0 = inlined_call_operand.vmem [shape: f32[8,8], index: 0, kind: input, shape index: {}]
  %s1 = inlined_call_operand.vmem [shape: f32[152,64], index: 1, kind: input, shape index: {}]
  %s2 = inlined_call_operand.hbm [shape: f32[8,6], index: 2, kind: output, shape index: {}]
  %s3 = sld [smem:[#allocation0]]
  $region18: #{tpu_custom_call.1} parent=0
    _
  %s5 = ssub.s32 1, %s3
  %s6 = scalar_select 0, %s5, %s3
  $region1: #{tpu_custom_call.1} parent=0
    #allocation2 [shape = 'u8[4096]{0}', space=vmem, size = 0x1000, scoped, tag = 'output window, operand 0, single buffered']
    #allocation3 [shape = 's32[1]{0}', space=sflag, size = 0x4, scoped, tag = 'scoped memory for tpu_custom_call.1']
    %7 = vsyncpa [#allocation3], 0
    // Predicated region
    $region2: #{tpu_custom_call.1} parent=1 // pred_check
      _
    $region3: #{tpu_custom_call.1} parent=1 // pred_check_branch
      %9 = sbr.rel (0) target = $region5
    $region4: #{tpu_custom_call.1} parent=1 // pred_region
      _
    $region5: #{tpu_custom_call.1} parent=1 // pred_fallthru
      _
    // Predicated region
    $region6: #{tpu_custom_call.1} parent=1 // pred_check
      _
    $region7: #{tpu_custom_call.1} parent=1 // pred_check_branch
      %11 = sbr.rel (0) target = $region9
    $region8: #{tpu_custom_call.1} parent=1 // pred_region
      _
    $region9: #{tpu_custom_call.1} parent=1 // pred_fallthru
      _
    %v12 = vld [vmem:[%s0] sm:$0xff]
    %v13 = vld [vmem:[%s1] sm:$0xff]
    %v14 = vld [vmem:[%s1 + $0x8] sm:$0xff]
    %v15 = vld [vmem:[%s1 + $0x10] sm:$0xff]
    %v16 = vld [vmem:[%s1 + $0x18] sm:$0xff]
    %v17 = vld [vmem:[%s1 + $0x20] sm:$0xff]
    %v18 = vld [vmem:[%s1 + $0x28] sm:$0xff]
    %v19 = vld [vmem:[%s1 + $0x30] sm:$0xff]
    %v20 = vld [vmem:[%s1 + $0x38] sm:$0xff]
    %v21 = vld [vmem:[%s1 + $0x40] sm:$0xff]
    %v22 = vld [vmem:[%s1 + $0x48] sm:$0x1]
    %v23 = vld [vmem:[%s1 + $0x50] sm:$0xff]
    %v24 = vld [vmem:[%s1 + $0x58] sm:$0xff]
    %v25 = vld [vmem:[%s1 + $0x60] sm:$0xff]
    %v26 = vld [vmem:[%s1 + $0x68] sm:$0xff]
    %v27 = vld [vmem:[%s1 + $0x70] sm:$0xff]
    %v28 = vld [vmem:[%s1 + $0x78] sm:$0xff]
    %v29 = vld [vmem:[%s1 + $0x80] sm:$0xff]
    %v30 = vld [vmem:[%s1 + $0x88] sm:$0xff]
    %v31 = vld [vmem:[%s1 + $0x90] sm:$0x1]
    %vm32 = vcmask 64512
    %v34 = vsel %vm32, %v12, 0
    %36 = vmatpush.msra.mxu0 0.0
    %37 = vmatpush.msra.mxu0 0.0
    %38 = vmatpush.msra.mxu0 0.0
    %39 = vmatpush.msra.mxu0 0.0
    %40 = vmatpush.msra.mxu0 0.0
    %41 = vmatpush.msra.mxu0 0.0
    %42 = vmatpush.msra.mxu0 0.0
    %43 = vmatpush.msra.mxu0 0.0
    %44 = vmatpush.msra.mxu0 0.0
    %45 = vmatpush.msra.mxu0 0.0
    %46 = vmatpush.msra.mxu0 0.0
    %47 = vmatpush.msra.mxu0 0.0
    %48 = vmatpush.msra.mxu0 0.0
    %49 = vmatpush.msra.mxu0 0.0
    %50 = vmatpush.msra.mxu0 0.0
    %51 = vmatpush.msra.mxu0 %v13
    %52 = vmatmul.f32.gmra.mxu0 %v34
    %v53 = vpop.f32.mrf.mxu0
    %v54 = vadd.f32 0.0, %v53
    %55 = vdwg.mxu0
    %v56 = vmax.f32 %v54, 0.0
    %v57 = vperm.slane %v22, 0
    %vm58 = vcmask 523264
    %v60 = vsel %vm58, %v56, 0
    %62 = vmatpush.msra.mxu0 0.0
    %63 = vmatpush.msra.mxu0 0.0
    %64 = vmatpush.msra.mxu0 0.0
    %65 = vmatpush.msra.mxu0 0.0
    %66 = vmatpush.msra.mxu0 0.0
    %67 = vmatpush.msra.mxu0 0.0
    %68 = vmatpush.msra.mxu0 0.0
    %69 = vmatpush.msra.mxu0 0.0
    %70 = vmatpush.msra.mxu0 %v21
    %71 = vmatpush.msra.mxu0 %v20
    %72 = vmatpush.msra.mxu0 %v19
    %73 = vmatpush.msra.mxu0 %v18
    %74 = vmatpush.msra.mxu0 %v17
    %75 = vmatpush.msra.mxu0 %v16
    %76 = vmatpush.msra.mxu0 %v15
    %77 = vmatpush.msra.mxu0 %v14
    %78 = vmatmul.f32.gmra.mxu0 %v60
    %v79 = vpop.f32.mrf.mxu0
    %v80 = vadd.f32 %v57, %v79
    %81 = vdwg.mxu0
    %v82 = vmax.f32 %v80, 0.0
    %v83 = vperm.slane %v31, 0
    %v85 = vsel %vm58, %v82, 0
    %87 = vmatpush.msra.mxu0 0.0
    %88 = vmatpush.msra.mxu0 0.0
    %89 = vmatpush.msra.mxu0 0.0
    %90 = vmatpush.msra.mxu0 0.0
    %91 = vmatpush.msra.mxu0 0.0
    %92 = vmatpush.msra.mxu0 0.0
    %93 = vmatpush.msra.mxu0 0.0
    %94 = vmatpush.msra.mxu0 0.0
    %95 = vmatpush.msra.mxu0 %v30
    %96 = vmatpush.msra.mxu0 %v29
    %97 = vmatpush.msra.mxu0 %v28
    %98 = vmatpush.msra.mxu0 %v27
    %99 = vmatpush.msra.mxu0 %v26
    %100 = vmatpush.msra.mxu0 %v25
    %101 = vmatpush.msra.mxu0 %v24
    %102 = vmatpush.msra.mxu0 %v23
    %103 = vmatmul.f32.gmra.mxu0 %v85
    %v104 = vpop.f32.mrf.mxu0
    %v105 = vadd.f32 %v83, %v104
    %106 = vdwg.mxu0
    %vm107 = vcmask 48128
    %v108 = vsel %vm107, %v105, -inf
    %109 = vmax.xlane.f32.xlu0 %v108
    %v110 = vpop.xlane.xlu0 %109
    %v111 = vsub.f32 %v105, %v110
    %v112 = vmul.f32 %v111, 1.442695
    %v113 = vpow.pop %v112
    %v114 = vsel %vm107, %v113, 0.0
    %115 = vadd.xlane.f32.xlu0 %v114
    %v116 = vpop.xlane.xlu0 %115
    %v117 = vrcp.pop %v116
    %v118 = vmul.f32 %v116, %v117
    %v119 = vsub.f32 1.0, %v118
    %v120 = vmul.f32 %v117, %v119
    %v121 = vadd.f32 %v117, %v120
    %vm122 = vweird.f32 %v116
    %vm123 = vweird.f32 %v117
    %vm124 = vmor %vm122, %vm123
    %v125 = vsel %vm124, %v117, %v121
    %v126 = vand.u32 2147483647, %v116
    %vm127 = vcmp.eq.f32.partialorder %v126, 8.507059e+37
    %v128 = vand.u32 %v116, 2147483648
    %v129 = vor.u32 1.1754944e-38, %v128
    %v130 = vsel %vm127, %v129, %v125
    %v131 = vmul.f32 %v113, %v130
    %132 = vst.msk [vmem:[#allocation2] sm:$0xff] %vm107, %v131
    // Predicated region
    $region10: #{tpu_custom_call.1} parent=1 // pred_check
      _
    $region11: #{tpu_custom_call.1} parent=1 // pred_check_branch
      %134 = sbr.rel (0) target = $region13
    $region12: #{tpu_custom_call.1} parent=1 // pred_region
      %136 = vsyncadd [#allocation3], 0
      %s138 = sshll.u32 [#allocation2], 4
      %s139 = int_to_ptr.vmem [resolvable:$true] %s138
      %s140 = sshll.u32 %s2, 4
      %s141 = int_to_ptr.hbm [resolvable:$true] %s140
      %143 = dma.vmem_to_hbm [thread:$0]  %s139, 128, %s141, [#allocation3]
    $region13: #{tpu_custom_call.1} parent=1 // pred_fallthru
      _
    // Predicated region
    $region14: #{tpu_custom_call.1} parent=1 // pred_check
      _
    $region15: #{tpu_custom_call.1} parent=1 // pred_check_branch
      %145 = sbr.rel (0) target = $region17
    $region16: #{tpu_custom_call.1} parent=1 // pred_region
      %147 = dma.done [#allocation3], 128
    $region17: #{tpu_custom_call.1} parent=1 // pred_fallthru
      _
    %148 = vsyncpa [#allocation3], 1

</llo_original>
